<compile_context>
chip_gen: v7x
topology: tpu7x:2x2x1
jax: 0.10.0
libtpu: 0.0.40
codegen_flags: <defaults>
</compile_context>

<pallas_src>
import jax
import jax.numpy as jnp
from jax.experimental import pallas as pl
from jax.experimental.pallas import tpu as pltpu


def gru_net_kernel(x_ref, h0_ref, w_ref, b_ref, lin_ref, y_ref, out_ref):
    """Single-invocation GRU(1 layer) + Linear forward, fully VMEM-resident.

    x_ref   : (T*B, ob_pad)     flattened input sequence (features zero-padded to 8n)
    h0_ref  : (B, H)            initial hidden state
    w_ref   : (ob_pad + H, 3H)  [W_ih ; W_hh], gates [r|z|n] along lanes, pre-transposed
    b_ref   : (2, 3H)           row 0: b_ih + [b_hh_r, b_hh_z, 0]  (folded gi bias)
                                row 1: [b_hh_n, 0, 0]
    lin_ref : (H + 1, A)        [W_lin ; b_lin], pre-transposed
    y_ref   : (T*B, A)          linear-layer output slab
    out_ref : (T*B, H)          hidden-state slab
    """
    B, H = h0_ref.shape
    TB, A = y_ref.shape
    T = TB // B
    ob_pad = x_ref.shape[1]

    # ---- one-time static slices of the packed operands (off the serial path) ----
    w_ih = w_ref[:ob_pad, :]                         # (ob_pad, 3H)
    w_hh = w_ref[ob_pad:, :]                         # (H, 3H)  sublane-aligned (ob_pad % 8 == 0)
    w_lin = lin_ref[:H, :]                           # (H, A)
    b_lin = lin_ref[H:H + 1, :]                      # (1, A)

    # ---- input projection hoisted out of the recurrence (single fused matmul) ----
    # gi already carries b_ih (all gates) and b_hh for the r/z gates.
    gi = jnp.dot(x_ref[...], w_ih, preferred_element_type=jnp.float32) + b_ref[0:1, :]
    # pre-split per time step so the sublane extracts are off the h-dependency chain
    gi_steps = [gi[t * B:(t + 1) * B, :] for t in range(T)]
    # b_hh_n must stay inside the loop (it is scaled by r); hoist its broadcast once.
    b_hn = jnp.broadcast_to(b_ref[1:2, :H], (B, H))

    # ---- recurrence: one fused (B, H) @ (H, 3H) matmul per step on the serial path ----
    h = h0_ref[...]                                  # (B, H)
    hs = []
    for t in range(T):                               # tiny static trip count -> unrolled
        g = gi_steps[t]                              # (B, 3H)
        gh = jnp.dot(h, w_hh, preferred_element_type=jnp.float32)   # (B, 3H)
        rz = jax.nn.sigmoid(g[:, :2 * H] + gh[:, :2 * H])           # (B, 2H) -> [r|z]
        r = rz[:, :H]
        z = rz[:, H:]
        n = jnp.tanh(g[:, 2 * H:] + r * (gh[:, 2 * H:] + b_hn))
        h = (1.0 - z) * n + z * h
        hs.append(h)

    # ---- single bulk store of hidden states; Linear fed from register values ----
    h_all = jnp.concatenate(hs, axis=0)              # (T*B, H)
    out_ref[...] = h_all.astype(out_ref.dtype)
    y = jnp.dot(h_all, w_lin, preferred_element_type=jnp.float32) + b_lin
    y_ref[...] = y.astype(y_ref.dtype)


def net_forward(x, h0, params):
    """Pallas implementation of Net.forward: returns (linear(out), out)."""
    T, B, ob = x.shape
    H = params["w_hh"].shape[0] // 3
    A = params["w_lin"].shape[0]
    ob_pad = ((ob + 7) // 8) * 8                      # keep the W_hh slice sublane-aligned

    # ---- pack operands (5 inputs instead of 8: call/DMA overhead dominates here) ----
    # PyTorch gate order [r, z, n] along rows of w_ih/w_hh -> lanes after transpose.
    w_ih_t = params["w_ih"].T                         # (ob, 3H)
    w_hh_t = params["w_hh"].T                         # (H, 3H)
    w_ih_pad = jnp.zeros((ob_pad, 3 * H), jnp.float32).at[:ob, :].set(w_ih_t)
    w_all = jnp.concatenate([w_ih_pad, w_hh_t], axis=0)              # (ob_pad + H, 3H)

    zeros_h = jnp.zeros((H,), jnp.float32)
    gi_bias = params["b_ih"] + jnp.concatenate([params["b_hh"][:2 * H], zeros_h])
    b_hn_row = jnp.concatenate([params["b_hh"][2 * H:], zeros_h, zeros_h])
    bias = jnp.stack([gi_bias, b_hn_row], axis=0)                    # (2, 3H)

    lin = jnp.concatenate([params["w_lin"].T, params["b_lin"][None, :]], axis=0)  # (H+1, A)

    x_flat = jnp.zeros((T * B, ob_pad), jnp.float32).at[:, :ob].set(x.reshape(T * B, ob))

    vmem = pl.BlockSpec(memory_space=pltpu.MemorySpace.VMEM)

    # TODO(synk): on v7x a single no-grid call occupies one of the two TensorCores;
    # for many independent sequences, add a leading batch grid axis with
    # dimension_semantics=("parallel",) to use both. At these toy sizes (tens of KB)
    # a single VMEM-resident call is the right shape.
    y, out = pl.pallas_call(
        gru_net_kernel,
        out_shape=(jax.ShapeDtypeStruct((T * B, A), jnp.float32),
                   jax.ShapeDtypeStruct((T * B, H), jnp.float32)),
        in_specs=[vmem] * 5,
        out_specs=(vmem, vmem),
    )(x_flat, h0, w_all, bias, lin)
    # lane-contiguous 2-D slabs inside the kernel; reshape to (T, B, .) outside.
    return y.reshape(T, B, A), out.reshape(T, B, H)


def reference_forward(x, h0, params):
    """Pure-JAX reference of nn.GRU(1 layer) + nn.Linear, for validation."""
    H = params["w_hh"].shape[0] // 3

    def step(h, x_t):
        gi = x_t @ params["w_ih"].T + params["b_ih"]
        gh = h @ params["w_hh"].T + params["b_hh"]
        i_r, i_z, i_n = gi[:, :H], gi[:, H:2 * H], gi[:, 2 * H:]
        h_r, h_z, h_n = gh[:, :H], gh[:, H:2 * H], gh[:, 2 * H:]
        r = jax.nn.sigmoid(i_r + h_r)
        z = jax.nn.sigmoid(i_z + h_z)
        n = jnp.tanh(i_n + r * h_n)
        h_new = (1.0 - z) * n + z * h
        return h_new, h_new

    _, out = jax.lax.scan(step, h0, x)
    y = out @ params["w_lin"].T + params["b_lin"]
    return y, out


def init_params(key, ob_size, num_h, act_size):
    ks = jax.random.split(key, 6)
    k_gru = 1.0 / jnp.sqrt(num_h)
    k_lin = 1.0 / jnp.sqrt(num_h)
    u = lambda k, shape, s: jax.random.uniform(k, shape, jnp.float32, -s, s)
    return {
        "w_ih": u(ks[0], (3 * num_h, ob_size), k_gru),
        "w_hh": u(ks[1], (3 * num_h, num_h), k_gru),
        "b_ih": u(ks[2], (3 * num_h,), k_gru),
        "b_hh": u(ks[3], (3 * num_h,), k_gru),
        "w_lin": u(ks[4], (act_size, num_h), k_lin),
        "b_lin": u(ks[5], (act_size,), k_lin),
    }


if __name__ == "__main__":
    T, B = 8, 2          # seq_len, batch
    ob_size = 4          # env.observation_space.shape[0] (synthetic)
    num_h = 32           # GRU hidden size
    act_size = 4         # env.action_space.n (synthetic)

    key = jax.random.PRNGKey(0)
    k_x, k_p = jax.random.split(key)
    x = jax.random.normal(k_x, (T, B, ob_size), jnp.float32)
    h0 = jnp.zeros((B, num_h), jnp.float32)   # h0=None in PyTorch -> zeros
    params = init_params(k_p, ob_size, num_h, act_size)

    y, out = jax.jit(net_forward)(x, h0, params)
    jax.block_until_ready((y, out))

    y_ref, out_ref = reference_forward(x, h0, params)
    assert y.shape == (T, B, act_size) and out.shape == (T, B, num_h)
    assert jnp.allclose(y, y_ref, atol=1e-5, rtol=1e-5)
    assert jnp.allclose(out, out_ref, atol=1e-5, rtol=1e-5)

    print("KERNEL_OK")
</pallas_src>

<mosaic_0001>
module attributes {stable_mosaic.version = 11 : i64} {
  func.func @gru_net_kernel(%arg0: memref<16x8xf32, #tpu.memory_space<vmem>>, %arg1: memref<2x32xf32, #tpu.memory_space<vmem>>, %arg2: memref<40x96xf32, #tpu.memory_space<vmem>>, %arg3: memref<2x96xf32, #tpu.memory_space<vmem>>, %arg4: memref<33x4xf32, #tpu.memory_space<vmem>>, %arg5: memref<16x4xf32, #tpu.memory_space<vmem>>, %arg6: memref<16x32xf32, #tpu.memory_space<vmem>>) attributes {dimension_semantics = [], scalar_prefetch = 0 : i64, scratch_operands = 0 : i64, tpu.core_type = #tpu.core_type<tc>} {
    %c0 = arith.constant 0 : index
    %c0_0 = arith.constant 0 : index
    %0 = vector.load %arg2[%c0, %c0_0] : memref<40x96xf32, #tpu.memory_space<vmem>>, vector<8x96xf32>
    %c8 = arith.constant 8 : index
    %c0_1 = arith.constant 0 : index
    %1 = vector.load %arg2[%c8, %c0_1] : memref<40x96xf32, #tpu.memory_space<vmem>>, vector<32x96xf32>
    %c0_2 = arith.constant 0 : index
    %c0_3 = arith.constant 0 : index
    %2 = vector.load %arg4[%c0_2, %c0_3] : memref<33x4xf32, #tpu.memory_space<vmem>>, vector<32x4xf32>
    %c32 = arith.constant 32 : index
    %c0_4 = arith.constant 0 : index
    %3 = vector.load %arg4[%c32, %c0_4] : memref<33x4xf32, #tpu.memory_space<vmem>>, vector<1x4xf32>
    %c0_5 = arith.constant 0 : index
    %c0_6 = arith.constant 0 : index
    %4 = vector.load %arg0[%c0_5, %c0_6] : memref<16x8xf32, #tpu.memory_space<vmem>>, vector<16x8xf32>
    %cst = arith.constant dense<0.000000e+00> : vector<16x96xf32>
    %5 = tpu.matmul %4, %0, %cst {dimension_numbers = #tpu.dot_dimension_numbers<[1], [0], [0], [1], [0, 0, 1, 1], [], []>} : vector<16x8xf32>, vector<8x96xf32>, vector<16x96xf32> -> vector<16x96xf32>
    %c0_7 = arith.constant 0 : index
    %c0_8 = arith.constant 0 : index
    %6 = vector.load %arg3[%c0_7, %c0_8] : memref<2x96xf32, #tpu.memory_space<vmem>>, vector<1x96xf32>
    %7 = vector.broadcast %6 : vector<1x96xf32> to vector<16x96xf32>
    %8 = arith.addf %5, %7 : vector<16x96xf32>
    %9 = vector.extract_strided_slice %8 {offsets = [0, 0], sizes = [2, 96], strides = [1, 1]} : vector<16x96xf32> to vector<2x96xf32>
    %10 = vector.extract_strided_slice %8 {offsets = [2, 0], sizes = [2, 96], strides = [1, 1]} : vector<16x96xf32> to vector<2x96xf32>
    %11 = vector.extract_strided_slice %8 {offsets = [4, 0], sizes = [2, 96], strides = [1, 1]} : vector<16x96xf32> to vector<2x96xf32>
    %12 = vector.extract_strided_slice %8 {offsets = [6, 0], sizes = [2, 96], strides = [1, 1]} : vector<16x96xf32> to vector<2x96xf32>
    %13 = vector.extract_strided_slice %8 {offsets = [8, 0], sizes = [2, 96], strides = [1, 1]} : vector<16x96xf32> to vector<2x96xf32>
    %14 = vector.extract_strided_slice %8 {offsets = [10, 0], sizes = [2, 96], strides = [1, 1]} : vector<16x96xf32> to vector<2x96xf32>
    %15 = vector.extract_strided_slice %8 {offsets = [12, 0], sizes = [2, 96], strides = [1, 1]} : vector<16x96xf32> to vector<2x96xf32>
    %16 = vector.extract_strided_slice %8 {offsets = [14, 0], sizes = [2, 96], strides = [1, 1]} : vector<16x96xf32> to vector<2x96xf32>
    %c1 = arith.constant 1 : index
    %c0_9 = arith.constant 0 : index
    %17 = vector.load %arg3[%c1, %c0_9] : memref<2x96xf32, #tpu.memory_space<vmem>>, vector<1x32xf32>
    %18 = vector.shape_cast %17 : vector<1x32xf32> to vector<1x32xf32>
    %19 = vector.broadcast %18 : vector<1x32xf32> to vector<2x32xf32>
    %c0_10 = arith.constant 0 : index
    %c0_11 = arith.constant 0 : index
    %20 = vector.load %arg1[%c0_10, %c0_11] : memref<2x32xf32, #tpu.memory_space<vmem>>, vector<2x32xf32>
    %cst_12 = arith.constant dense<0.000000e+00> : vector<2x96xf32>
    %21 = tpu.matmul %20, %1, %cst_12 {dimension_numbers = #tpu.dot_dimension_numbers<[1], [0], [0], [1], [0, 0, 1, 1], [], []>} : vector<2x32xf32>, vector<32x96xf32>, vector<2x96xf32> -> vector<2x96xf32>
    %22 = vector.extract_strided_slice %9 {offsets = [0, 0], sizes = [2, 64], strides = [1, 1]} : vector<2x96xf32> to vector<2x64xf32>
    %23 = vector.extract_strided_slice %21 {offsets = [0, 0], sizes = [2, 64], strides = [1, 1]} : vector<2x96xf32> to vector<2x64xf32>
    %24 = arith.addf %22, %23 : vector<2x64xf32>
    %25 = arith.negf %24 : vector<2x64xf32>
    %26 = math.exp %25 : vector<2x64xf32>
    %cst_13 = arith.constant 1.000000e+00 : f32
    %27 = vector.broadcast %cst_13 : f32 to vector<2x64xf32>
    %28 = arith.addf %27, %26 : vector<2x64xf32>
    %29 = arith.divf %27, %28 : vector<2x64xf32>
    %30 = vector.extract_strided_slice %29 {offsets = [0, 0], sizes = [2, 32], strides = [1, 1]} : vector<2x64xf32> to vector<2x32xf32>
    %31 = vector.extract_strided_slice %29 {offsets = [0, 32], sizes = [2, 32], strides = [1, 1]} : vector<2x64xf32> to vector<2x32xf32>
    %32 = vector.extract_strided_slice %9 {offsets = [0, 64], sizes = [2, 32], strides = [1, 1]} : vector<2x96xf32> to vector<2x32xf32>
    %33 = vector.extract_strided_slice %21 {offsets = [0, 64], sizes = [2, 32], strides = [1, 1]} : vector<2x96xf32> to vector<2x32xf32>
    %34 = arith.addf %33, %19 : vector<2x32xf32>
    %35 = arith.mulf %30, %34 : vector<2x32xf32>
    %36 = arith.addf %32, %35 : vector<2x32xf32>
    %37 = math.tanh %36 : vector<2x32xf32>
    %cst_14 = arith.constant 1.000000e+00 : f32
    %38 = vector.broadcast %cst_14 : f32 to vector<2x32xf32>
    %39 = arith.subf %38, %31 : vector<2x32xf32>
    %40 = arith.mulf %39, %37 : vector<2x32xf32>
    %41 = arith.mulf %31, %20 : vector<2x32xf32>
    %42 = arith.addf %40, %41 : vector<2x32xf32>
    %cst_15 = arith.constant dense<0.000000e+00> : vector<2x96xf32>
    %43 = tpu.matmul %42, %1, %cst_15 {dimension_numbers = #tpu.dot_dimension_numbers<[1], [0], [0], [1], [0, 0, 1, 1], [], []>} : vector<2x32xf32>, vector<32x96xf32>, vector<2x96xf32> -> vector<2x96xf32>
    %44 = vector.extract_strided_slice %10 {offsets = [0, 0], sizes = [2, 64], strides = [1, 1]} : vector<2x96xf32> to vector<2x64xf32>
    %45 = vector.extract_strided_slice %43 {offsets = [0, 0], sizes = [2, 64], strides = [1, 1]} : vector<2x96xf32> to vector<2x64xf32>
    %46 = arith.addf %44, %45 : vector<2x64xf32>
    %47 = arith.negf %46 : vector<2x64xf32>
    %48 = math.exp %47 : vector<2x64xf32>
    %cst_16 = arith.constant 1.000000e+00 : f32
    %49 = vector.broadcast %cst_16 : f32 to vector<2x64xf32>
    %50 = arith.addf %49, %48 : vector<2x64xf32>
    %51 = arith.divf %49, %50 : vector<2x64xf32>
    %52 = vector.extract_strided_slice %51 {offsets = [0, 0], sizes = [2, 32], strides = [1, 1]} : vector<2x64xf32> to vector<2x32xf32>
    %53 = vector.extract_strided_slice %51 {offsets = [0, 32], sizes = [2, 32], strides = [1, 1]} : vector<2x64xf32> to vector<2x32xf32>
    %54 = vector.extract_strided_slice %10 {offsets = [0, 64], sizes = [2, 32], strides = [1, 1]} : vector<2x96xf32> to vector<2x32xf32>
    %55 = vector.extract_strided_slice %43 {offsets = [0, 64], sizes = [2, 32], strides = [1, 1]} : vector<2x96xf32> to vector<2x32xf32>
    %56 = arith.addf %55, %19 : vector<2x32xf32>
    %57 = arith.mulf %52, %56 : vector<2x32xf32>
    %58 = arith.addf %54, %57 : vector<2x32xf32>
    %59 = math.tanh %58 : vector<2x32xf32>
    %cst_17 = arith.constant 1.000000e+00 : f32
    %60 = vector.broadcast %cst_17 : f32 to vector<2x32xf32>
    %61 = arith.subf %60, %53 : vector<2x32xf32>
    %62 = arith.mulf %61, %59 : vector<2x32xf32>
    %63 = arith.mulf %53, %42 : vector<2x32xf32>
    %64 = arith.addf %62, %63 : vector<2x32xf32>
    %cst_18 = arith.constant dense<0.000000e+00> : vector<2x96xf32>
    %65 = tpu.matmul %64, %1, %cst_18 {dimension_numbers = #tpu.dot_dimension_numbers<[1], [0], [0], [1], [0, 0, 1, 1], [], []>} : vector<2x32xf32>, vector<32x96xf32>, vector<2x96xf32> -> vector<2x96xf32>
    %66 = vector.extract_strided_slice %11 {offsets = [0, 0], sizes = [2, 64], strides = [1, 1]} : vector<2x96xf32> to vector<2x64xf32>
    %67 = vector.extract_strided_slice %65 {offsets = [0, 0], sizes = [2, 64], strides = [1, 1]} : vector<2x96xf32> to vector<2x64xf32>
    %68 = arith.addf %66, %67 : vector<2x64xf32>
    %69 = arith.negf %68 : vector<2x64xf32>
    %70 = math.exp %69 : vector<2x64xf32>
    %cst_19 = arith.constant 1.000000e+00 : f32
    %71 = vector.broadcast %cst_19 : f32 to vector<2x64xf32>
    %72 = arith.addf %71, %70 : vector<2x64xf32>
    %73 = arith.divf %71, %72 : vector<2x64xf32>
    %74 = vector.extract_strided_slice %73 {offsets = [0, 0], sizes = [2, 32], strides = [1, 1]} : vector<2x64xf32> to vector<2x32xf32>
    %75 = vector.extract_strided_slice %73 {offsets = [0, 32], sizes = [2, 32], strides = [1, 1]} : vector<2x64xf32> to vector<2x32xf32>
    %76 = vector.extract_strided_slice %11 {offsets = [0, 64], sizes = [2, 32], strides = [1, 1]} : vector<2x96xf32> to vector<2x32xf32>
    %77 = vector.extract_strided_slice %65 {offsets = [0, 64], sizes = [2, 32], strides = [1, 1]} : vector<2x96xf32> to vector<2x32xf32>
    %78 = arith.addf %77, %19 : vector<2x32xf32>
    %79 = arith.mulf %74, %78 : vector<2x32xf32>
    %80 = arith.addf %76, %79 : vector<2x32xf32>
    %81 = math.tanh %80 : vector<2x32xf32>
    %cst_20 = arith.constant 1.000000e+00 : f32
    %82 = vector.broadcast %cst_20 : f32 to vector<2x32xf32>
    %83 = arith.subf %82, %75 : vector<2x32xf32>
    %84 = arith.mulf %83, %81 : vector<2x32xf32>
    %85 = arith.mulf %75, %64 : vector<2x32xf32>
    %86 = arith.addf %84, %85 : vector<2x32xf32>
    %cst_21 = arith.constant dense<0.000000e+00> : vector<2x96xf32>
    %87 = tpu.matmul %86, %1, %cst_21 {dimension_numbers = #tpu.dot_dimension_numbers<[1], [0], [0], [1], [0, 0, 1, 1], [], []>} : vector<2x32xf32>, vector<32x96xf32>, vector<2x96xf32> -> vector<2x96xf32>
    %88 = vector.extract_strided_slice %12 {offsets = [0, 0], sizes = [2, 64], strides = [1, 1]} : vector<2x96xf32> to vector<2x64xf32>
    %89 = vector.extract_strided_slice %87 {offsets = [0, 0], sizes = [2, 64], strides = [1, 1]} : vector<2x96xf32> to vector<2x64xf32>
    %90 = arith.addf %88, %89 : vector<2x64xf32>
    %91 = arith.negf %90 : vector<2x64xf32>
    %92 = math.exp %91 : vector<2x64xf32>
    %cst_22 = arith.constant 1.000000e+00 : f32
    %93 = vector.broadcast %cst_22 : f32 to vector<2x64xf32>
    %94 = arith.addf %93, %92 : vector<2x64xf32>
    %95 = arith.divf %93, %94 : vector<2x64xf32>
    %96 = vector.extract_strided_slice %95 {offsets = [0, 0], sizes = [2, 32], strides = [1, 1]} : vector<2x64xf32> to vector<2x32xf32>
    %97 = vector.extract_strided_slice %95 {offsets = [0, 32], sizes = [2, 32], strides = [1, 1]} : vector<2x64xf32> to vector<2x32xf32>
    %98 = vector.extract_strided_slice %12 {offsets = [0, 64], sizes = [2, 32], strides = [1, 1]} : vector<2x96xf32> to vector<2x32xf32>
    %99 = vector.extract_strided_slice %87 {offsets = [0, 64], sizes = [2, 32], strides = [1, 1]} : vector<2x96xf32> to vector<2x32xf32>
    %100 = arith.addf %99, %19 : vector<2x32xf32>
    %101 = arith.mulf %96, %100 : vector<2x32xf32>
    %102 = arith.addf %98, %101 : vector<2x32xf32>
    %103 = math.tanh %102 : vector<2x32xf32>
    %cst_23 = arith.constant 1.000000e+00 : f32
    %104 = vector.broadcast %cst_23 : f32 to vector<2x32xf32>
    %105 = arith.subf %104, %97 : vector<2x32xf32>
    %106 = arith.mulf %105, %103 : vector<2x32xf32>
    %107 = arith.mulf %97, %86 : vector<2x32xf32>
    %108 = arith.addf %106, %107 : vector<2x32xf32>
    %cst_24 = arith.constant dense<0.000000e+00> : vector<2x96xf32>
    %109 = tpu.matmul %108, %1, %cst_24 {dimension_numbers = #tpu.dot_dimension_numbers<[1], [0], [0], [1], [0, 0, 1, 1], [], []>} : vector<2x32xf32>, vector<32x96xf32>, vector<2x96xf32> -> vector<2x96xf32>
    %110 = vector.extract_strided_slice %13 {offsets = [0, 0], sizes = [2, 64], strides = [1, 1]} : vector<2x96xf32> to vector<2x64xf32>
    %111 = vector.extract_strided_slice %109 {offsets = [0, 0], sizes = [2, 64], strides = [1, 1]} : vector<2x96xf32> to vector<2x64xf32>
    %112 = arith.addf %110, %111 : vector<2x64xf32>
    %113 = arith.negf %112 : vector<2x64xf32>
    %114 = math.exp %113 : vector<2x64xf32>
    %cst_25 = arith.constant 1.000000e+00 : f32
    %115 = vector.broadcast %cst_25 : f32 to vector<2x64xf32>
    %116 = arith.addf %115, %114 : vector<2x64xf32>
    %117 = arith.divf %115, %116 : vector<2x64xf32>
    %118 = vector.extract_strided_slice %117 {offsets = [0, 0], sizes = [2, 32], strides = [1, 1]} : vector<2x64xf32> to vector<2x32xf32>
    %119 = vector.extract_strided_slice %117 {offsets = [0, 32], sizes = [2, 32], strides = [1, 1]} : vector<2x64xf32> to vector<2x32xf32>
    %120 = vector.extract_strided_slice %13 {offsets = [0, 64], sizes = [2, 32], strides = [1, 1]} : vector<2x96xf32> to vector<2x32xf32>
    %121 = vector.extract_strided_slice %109 {offsets = [0, 64], sizes = [2, 32], strides = [1, 1]} : vector<2x96xf32> to vector<2x32xf32>
    %122 = arith.addf %121, %19 : vector<2x32xf32>
    %123 = arith.mulf %118, %122 : vector<2x32xf32>
    %124 = arith.addf %120, %123 : vector<2x32xf32>
    %125 = math.tanh %124 : vector<2x32xf32>
    %cst_26 = arith.constant 1.000000e+00 : f32
    %126 = vector.broadcast %cst_26 : f32 to vector<2x32xf32>
    %127 = arith.subf %126, %119 : vector<2x32xf32>
    %128 = arith.mulf %127, %125 : vector<2x32xf32>
    %129 = arith.mulf %119, %108 : vector<2x32xf32>
    %130 = arith.addf %128, %129 : vector<2x32xf32>
    %cst_27 = arith.constant dense<0.000000e+00> : vector<2x96xf32>
    %131 = tpu.matmul %130, %1, %cst_27 {dimension_numbers = #tpu.dot_dimension_numbers<[1], [0], [0], [1], [0, 0, 1, 1], [], []>} : vector<2x32xf32>, vector<32x96xf32>, vector<2x96xf32> -> vector<2x96xf32>
    %132 = vector.extract_strided_slice %14 {offsets = [0, 0], sizes = [2, 64], strides = [1, 1]} : vector<2x96xf32> to vector<2x64xf32>
    %133 = vector.extract_strided_slice %131 {offsets = [0, 0], sizes = [2, 64], strides = [1, 1]} : vector<2x96xf32> to vector<2x64xf32>
    %134 = arith.addf %132, %133 : vector<2x64xf32>
    %135 = arith.negf %134 : vector<2x64xf32>
    %136 = math.exp %135 : vector<2x64xf32>
    %cst_28 = arith.constant 1.000000e+00 : f32
    %137 = vector.broadcast %cst_28 : f32 to vector<2x64xf32>
    %138 = arith.addf %137, %136 : vector<2x64xf32>
    %139 = arith.divf %137, %138 : vector<2x64xf32>
    %140 = vector.extract_strided_slice %139 {offsets = [0, 0], sizes = [2, 32], strides = [1, 1]} : vector<2x64xf32> to vector<2x32xf32>
    %141 = vector.extract_strided_slice %139 {offsets = [0, 32], sizes = [2, 32], strides = [1, 1]} : vector<2x64xf32> to vector<2x32xf32>
    %142 = vector.extract_strided_slice %14 {offsets = [0, 64], sizes = [2, 32], strides = [1, 1]} : vector<2x96xf32> to vector<2x32xf32>
    %143 = vector.extract_strided_slice %131 {offsets = [0, 64], sizes = [2, 32], strides = [1, 1]} : vector<2x96xf32> to vector<2x32xf32>
    %144 = arith.addf %143, %19 : vector<2x32xf32>
    %145 = arith.mulf %140, %144 : vector<2x32xf32>
    %146 = arith.addf %142, %145 : vector<2x32xf32>
    %147 = math.tanh %146 : vector<2x32xf32>
    %cst_29 = arith.constant 1.000000e+00 : f32
    %148 = vector.broadcast %cst_29 : f32 to vector<2x32xf32>
    %149 = arith.subf %148, %141 : vector<2x32xf32>
    %150 = arith.mulf %149, %147 : vector<2x32xf32>
    %151 = arith.mulf %141, %130 : vector<2x32xf32>
    %152 = arith.addf %150, %151 : vector<2x32xf32>
    %cst_30 = arith.constant dense<0.000000e+00> : vector<2x96xf32>
    %153 = tpu.matmul %152, %1, %cst_30 {dimension_numbers = #tpu.dot_dimension_numbers<[1], [0], [0], [1], [0, 0, 1, 1], [], []>} : vector<2x32xf32>, vector<32x96xf32>, vector<2x96xf32> -> vector<2x96xf32>
    %154 = vector.extract_strided_slice %15 {offsets = [0, 0], sizes = [2, 64], strides = [1, 1]} : vector<2x96xf32> to vector<2x64xf32>
    %155 = vector.extract_strided_slice %153 {offsets = [0, 0], sizes = [2, 64], strides = [1, 1]} : vector<2x96xf32> to vector<2x64xf32>
    %156 = arith.addf %154, %155 : vector<2x64xf32>
    %157 = arith.negf %156 : vector<2x64xf32>
    %158 = math.exp %157 : vector<2x64xf32>
    %cst_31 = arith.constant 1.000000e+00 : f32
    %159 = vector.broadcast %cst_31 : f32 to vector<2x64xf32>
    %160 = arith.addf %159, %158 : vector<2x64xf32>
    %161 = arith.divf %159, %160 : vector<2x64xf32>
    %162 = vector.extract_strided_slice %161 {offsets = [0, 0], sizes = [2, 32], strides = [1, 1]} : vector<2x64xf32> to vector<2x32xf32>
    %163 = vector.extract_strided_slice %161 {offsets = [0, 32], sizes = [2, 32], strides = [1, 1]} : vector<2x64xf32> to vector<2x32xf32>
    %164 = vector.extract_strided_slice %15 {offsets = [0, 64], sizes = [2, 32], strides = [1, 1]} : vector<2x96xf32> to vector<2x32xf32>
    %165 = vector.extract_strided_slice %153 {offsets = [0, 64], sizes = [2, 32], strides = [1, 1]} : vector<2x96xf32> to vector<2x32xf32>
    %166 = arith.addf %165, %19 : vector<2x32xf32>
    %167 = arith.mulf %162, %166 : vector<2x32xf32>
    %168 = arith.addf %164, %167 : vector<2x32xf32>
    %169 = math.tanh %168 : vector<2x32xf32>
    %cst_32 = arith.constant 1.000000e+00 : f32
    %170 = vector.broadcast %cst_32 : f32 to vector<2x32xf32>
    %171 = arith.subf %170, %163 : vector<2x32xf32>
    %172 = arith.mulf %171, %169 : vector<2x32xf32>
    %173 = arith.mulf %163, %152 : vector<2x32xf32>
    %174 = arith.addf %172, %173 : vector<2x32xf32>
    %cst_33 = arith.constant dense<0.000000e+00> : vector<2x96xf32>
    %175 = tpu.matmul %174, %1, %cst_33 {dimension_numbers = #tpu.dot_dimension_numbers<[1], [0], [0], [1], [0, 0, 1, 1], [], []>} : vector<2x32xf32>, vector<32x96xf32>, vector<2x96xf32> -> vector<2x96xf32>
    %176 = vector.extract_strided_slice %16 {offsets = [0, 0], sizes = [2, 64], strides = [1, 1]} : vector<2x96xf32> to vector<2x64xf32>
    %177 = vector.extract_strided_slice %175 {offsets = [0, 0], sizes = [2, 64], strides = [1, 1]} : vector<2x96xf32> to vector<2x64xf32>
    %178 = arith.addf %176, %177 : vector<2x64xf32>
    %179 = arith.negf %178 : vector<2x64xf32>
    %180 = math.exp %179 : vector<2x64xf32>
    %cst_34 = arith.constant 1.000000e+00 : f32
    %181 = vector.broadcast %cst_34 : f32 to vector<2x64xf32>
    %182 = arith.addf %181, %180 : vector<2x64xf32>
    %183 = arith.divf %181, %182 : vector<2x64xf32>
    %184 = vector.extract_strided_slice %183 {offsets = [0, 0], sizes = [2, 32], strides = [1, 1]} : vector<2x64xf32> to vector<2x32xf32>
    %185 = vector.extract_strided_slice %183 {offsets = [0, 32], sizes = [2, 32], strides = [1, 1]} : vector<2x64xf32> to vector<2x32xf32>
    %186 = vector.extract_strided_slice %16 {offsets = [0, 64], sizes = [2, 32], strides = [1, 1]} : vector<2x96xf32> to vector<2x32xf32>
    %187 = vector.extract_strided_slice %175 {offsets = [0, 64], sizes = [2, 32], strides = [1, 1]} : vector<2x96xf32> to vector<2x32xf32>
    %188 = arith.addf %187, %19 : vector<2x32xf32>
    %189 = arith.mulf %184, %188 : vector<2x32xf32>
    %190 = arith.addf %186, %189 : vector<2x32xf32>
    %191 = math.tanh %190 : vector<2x32xf32>
    %cst_35 = arith.constant 1.000000e+00 : f32
    %192 = vector.broadcast %cst_35 : f32 to vector<2x32xf32>
    %193 = arith.subf %192, %185 : vector<2x32xf32>
    %194 = arith.mulf %193, %191 : vector<2x32xf32>
    %195 = arith.mulf %185, %174 : vector<2x32xf32>
    %196 = arith.addf %194, %195 : vector<2x32xf32>
    %197 = tpu.concatenate %42, %64, %86, %108, %130, %152, %174, %196 in 0 : vector<2x32xf32>, vector<2x32xf32>, vector<2x32xf32>, vector<2x32xf32>, vector<2x32xf32>, vector<2x32xf32>, vector<2x32xf32>, vector<2x32xf32> -> vector<16x32xf32>
    %c0_36 = arith.constant 0 : index
    %c0_37 = arith.constant 0 : index
    %198 = vector.load %arg6[%c0_36, %c0_37] : memref<16x32xf32, #tpu.memory_space<vmem>>, vector<16x32xf32>
    tpu.vector_store %arg6[%c0_36, %c0_37], %197 {strides = array<i32>} : memref<16x32xf32, #tpu.memory_space<vmem>>, vector<16x32xf32>,
    %cst_38 = arith.constant dense<0.000000e+00> : vector<16x4xf32>
    %199 = tpu.matmul %197, %2, %cst_38 {dimension_numbers = #tpu.dot_dimension_numbers<[1], [0], [0], [1], [0, 0, 1, 1], [], []>} : vector<16x32xf32>, vector<32x4xf32>, vector<16x4xf32> -> vector<16x4xf32>
    %200 = vector.broadcast %3 : vector<1x4xf32> to vector<16x4xf32>
    %201 = arith.addf %199, %200 : vector<16x4xf32>
    %c0_39 = arith.constant 0 : index
    %c0_40 = arith.constant 0 : index
    %202 = vector.load %arg5[%c0_39, %c0_40] : memref<16x4xf32, #tpu.memory_space<vmem>>, vector<16x4xf32>
    tpu.vector_store %arg5[%c0_39, %c0_40], %201 {strides = array<i32>} : memref<16x4xf32, #tpu.memory_space<vmem>>, vector<16x4xf32>,
    return
  }
}

</mosaic_0001>

<llo_original>
// kernel: net_forward.1
$region0: #{net_forward.1}
  #allocation0 [shape = 'u32[]', space=smem, size = 0x4, offset = 0x4, fixed_abs, tag = 'smem constant byte address 0x4 - core index']
  #allocation1 [shape = 'u32[144,128]{1,0:T(1,128)}', space=vmem, size = 0x12000, scoped, tag = 'internal scratch']
  %s0 = inlined_call_operand.vmem [shape: f32[16,8], index: 0, kind: input, shape index: {}]
  %s1 = inlined_call_operand.vmem [shape: f32[2,32], index: 1, kind: input, shape index: {}]
  %s2 = inlined_call_operand.vmem [shape: f32[40,96], index: 2, kind: input, shape index: {}]
  %s3 = inlined_call_operand.vmem [shape: f32[2,96], index: 3, kind: input, shape index: {}]
  %s4 = inlined_call_operand.vmem [shape: f32[33,4], index: 4, kind: input, shape index: {}]
  %s5 = inlined_call_operand.vmem [shape: f32[16,4], index: 5, kind: output, shape index: {0}]
  %s6 = inlined_call_operand.hbm [shape: f32[16,32], index: 6, kind: output, shape index: {1}]
  %7 = xla_tuple %s5, %s6
  %s8 = sld [smem:[#allocation0]]
  $region38: #{net_forward.1} parent=0
    _
  %s10 = ssub.s32 1, %s8
  %s11 = scalar_select 0, %s10, %s8
  $region1: #{net_forward.1} parent=0
    #allocation2 [shape = 'u8[8192]{0}', space=vmem, size = 0x2000, scoped, tag = 'output window, operand 1, single buffered']
    #allocation3 [shape = 's32[1]{0}', space=sflag, size = 0x4, scoped, tag = 'scoped memory for net_forward.1']
    %12 = vsyncpa [#allocation3], 0
    // Predicated region
    $region2: #{net_forward.1} parent=1 // pred_check
      _
    $region3: #{net_forward.1} parent=1 // pred_check_branch
      %14 = sbr.rel (0) target = $region5
    $region4: #{net_forward.1} parent=1 // pred_region
      _
    $region5: #{net_forward.1} parent=1 // pred_fallthru
      _
    // Predicated region
    $region6: #{net_forward.1} parent=1 // pred_check
      _
    $region7: #{net_forward.1} parent=1 // pred_check_branch
      %16 = sbr.rel (0) target = $region9
    $region8: #{net_forward.1} parent=1 // pred_region
      _
    $region9: #{net_forward.1} parent=1 // pred_fallthru
      _
    // Predicated region
    $region10: #{net_forward.1} parent=1 // pred_check
      _
    $region11: #{net_forward.1} parent=1 // pred_check_branch
      %18 = sbr.rel (0) target = $region13
    $region12: #{net_forward.1} parent=1 // pred_region
      _
    $region13: #{net_forward.1} parent=1 // pred_fallthru
      _
    // Predicated region
    $region14: #{net_forward.1} parent=1 // pred_check
      _
    $region15: #{net_forward.1} parent=1 // pred_check_branch
      %20 = sbr.rel (0) target = $region17
    $region16: #{net_forward.1} parent=1 // pred_region
      _
    $region17: #{net_forward.1} parent=1 // pred_fallthru
      _
    // Predicated region
    $region18: #{net_forward.1} parent=1 // pred_check
      _
    $region19: #{net_forward.1} parent=1 // pred_check_branch
      %22 = sbr.rel (0) target = $region21
    $region20: #{net_forward.1} parent=1 // pred_region
      _
    $region21: #{net_forward.1} parent=1 // pred_fallthru
      _
    %v23 = vld [vmem:[%s2] sm:$0xff]
    %v24 = vld [vmem:[%s2 + $0x8] sm:$0xff]
    %v25 = vld [vmem:[%s2 + $0x10] sm:$0xff]
    %v26 = vld [vmem:[%s2 + $0x18] sm:$0xff]
    %v27 = vld [vmem:[%s2 + $0x20] sm:$0xff]
    %v28 = vld [vmem:[%s4] sm:$0xff]
    %v29 = vld [vmem:[%s4 + $0x8] sm:$0xff]
    %v30 = vld [vmem:[%s4 + $0x10] sm:$0xff]
    %v31 = vld [vmem:[%s4 + $0x18] sm:$0xff]
    %v32 = vld [vmem:[%s4 + $0x20] sm:$0x1]
    %v33 = vld [vmem:[%s0] sm:$0xff]
    %v34 = vld [vmem:[%s0 + $0x8] sm:$0xff]
    %v35 = vld [vmem:[%s3] sm:$0x1]
    %v36 = vlaneseq
    %v37 = vshrl.u32 %v36, 7
    %v38 = vsub.s32 0, %v37
    %v39 = vrot.slane %v35, %v38
    %vm40 = vcmask 64512
    %v42 = vsel %vm40, %v33, 0
    %v45 = vsel %vm40, %v34, 0
    %47 = vmatprep.subr.mxu0 0.0
    %48 = vmatpush1.msra.mxu0 %v23
    %49 = vmatprep.subr.mxu0 0.0
    %50 = vmatpush1.msra.mxu0 0.0
    %51 = vmatprep.subr.mxu0 0.0
    %52 = vmatpush1.msra.mxu0 0.0
    %53 = vmatprep.subr.mxu0 0.0
    %54 = vmatpush1.msra.mxu0 0.0
    %55 = vmatprep.subr.mxu0 0.0
    %56 = vmatpush1.msra.mxu0 0.0
    %57 = vmatprep.subr.mxu0 0.0
    %58 = vmatpush1.msra.mxu0 0.0
    %59 = vmatprep.subr.mxu0 0.0
    %60 = vmatpush1.msra.mxu0 0.0
    %61 = vmatprep.subr.mxu0 0.0
    %62 = vmatpush1.msra.mxu0 0.0
    %63 = vmatprep.subr.mxu0 0.0
    %64 = vmatpush1.msra.mxu0 0.0
    %65 = vmatprep.subr.mxu0 0.0
    %66 = vmatpush1.msra.mxu0 0.0
    %67 = vmatprep.subr.mxu0 0.0
    %68 = vmatpush1.msra.mxu0 0.0
    %69 = vmatprep.subr.mxu0 0.0
    %70 = vmatpush1.msra.mxu0 0.0
    %71 = vmatprep.subr.mxu0 0.0
    %72 = vmatpush1.msra.mxu0 0.0
    %73 = vmatprep.subr.mxu0 0.0
    %74 = vmatpush1.msra.mxu0 0.0
    %75 = vmatprep.subr.mxu0 0.0
    %76 = vmatpush1.msra.mxu0 0.0
    %77 = vmatprep.subr.mxu0 0.0
    %78 = vmatpush1.msra.mxu0 0.0
    %79 = vmatprep.subr.mxu0 0.0
    %80 = vmatpush1.msra.mxu0 0.0
    %81 = vmatprep.subr.mxu0 0.0
    %82 = vmatpush1.msra.mxu0 0.0
    %83 = vmatprep.subr.mxu0 0.0
    %84 = vmatpush1.msra.mxu0 0.0
    %85 = vmatprep.subr.mxu0 0.0
    %86 = vmatpush1.msra.mxu0 0.0
    %87 = vmatprep.subr.mxu0 0.0
    %88 = vmatpush1.msra.mxu0 0.0
    %89 = vmatprep.subr.mxu0 0.0
    %90 = vmatpush1.msra.mxu0 0.0
    %91 = vmatprep.subr.mxu0 0.0
    %92 = vmatpush1.msra.mxu0 0.0
    %93 = vmatprep.subr.mxu0 0.0
    %94 = vmatpush1.msra.mxu0 0.0
    %95 = vmatprep.subr.mxu0 0.0
    %96 = vmatpush1.msra.mxu0 0.0
    %97 = vmatprep.subr.mxu0 0.0
    %98 = vmatpush1.msra.mxu0 0.0
    %99 = vmatprep.subr.mxu0 0.0
    %100 = vmatpush1.msra.mxu0 0.0
    %101 = vmatprep.subr.mxu0 0.0
    %102 = vmatpush1.msra.mxu0 0.0
    %103 = vmatprep.subr.mxu0 0.0
    %104 = vmatpush1.msra.mxu0 0.0
    %105 = vmatprep.subr.mxu0 0.0
    %106 = vmatpush1.msra.mxu0 0.0
    %107 = vmatprep.subr.mxu0 0.0
    %108 = vmatpush1.msra.mxu0 0.0
    %109 = vmatprep.subr.mxu0 0.0
    %110 = vmatpush1.msra.mxu0 0.0
    %111 = vmatprep.mubr.f32.mxu0 0.0
    %112 = vmatmul.mubr.f32.gmra.mrb[0].mxu0 %v42
    %v113 = vpop.f32.mrb[0].mxu0
    %v114 = vadd.f32 %v39, %v113
    %v115 = vpop.f32.mrb[0].mxu0
    %116 = vmatprep.mubr.f32.mxu0 0.0
    %117 = vmatmul.mubr.f32.gmra.mrb[0].mxu0 %v45
    %v118 = vpop.f32.mrb[0].mxu0
    %v119 = vadd.f32 %v39, %v118
    %v120 = vpop.f32.mrb[0].mxu0
    %121 = vdwg.mxu0
    %v122 = vld [vmem:[%s3 + $0x1] sm:$0x1]
    %v123 = vlaneseq
    %v124 = vshrl.u32 %v123, 7
    %v125 = vsub.s32 0, %v124
    %v126 = vrot.slane %v122, %v125
    %v127 = vld [vmem:[%s1] sm:$0x3]
    %vm128 = vcmask 261120
    %v130 = vsel %vm128, %v127, 0
    %132 = vmatprep.subr.mxu0 0.0
    %133 = vmatpush1.msra.mxu0 %v24
    %134 = vmatprep.subr.mxu0 0.0
    %135 = vmatpush1.msra.mxu0 %v25
    %136 = vmatprep.subr.mxu0 0.0
    %137 = vmatpush1.msra.mxu0 %v26
    %138 = vmatprep.subr.mxu0 0.0
    %139 = vmatpush1.msra.mxu0 %v27
    %140 = vmatprep.subr.mxu0 0.0
    %141 = vmatpush1.msra.mxu0 0.0
    %142 = vmatprep.subr.mxu0 0.0
    %143 = vmatpush1.msra.mxu0 0.0
    %144 = vmatprep.subr.mxu0 0.0
    %145 = vmatpush1.msra.mxu0 0.0
    %146 = vmatprep.subr.mxu0 0.0
    %147 = vmatpush1.msra.mxu0 0.0
    %148 = vmatprep.subr.mxu0 0.0
    %149 = vmatpush1.msra.mxu0 0.0
    %150 = vmatprep.subr.mxu0 0.0
    %151 = vmatpush1.msra.mxu0 0.0
    %152 = vmatprep.subr.mxu0 0.0
    %153 = vmatpush1.msra.mxu0 0.0
    %154 = vmatprep.subr.mxu0 0.0
    %155 = vmatpush1.msra.mxu0 0.0
    %156 = vmatprep.subr.mxu0 0.0
    %157 = vmatpush1.msra.mxu0 0.0
    %158 = vmatprep.subr.mxu0 0.0
    %159 = vmatpush1.msra.mxu0 0.0
    %160 = vmatprep.subr.mxu0 0.0
    %161 = vmatpush1.msra.mxu0 0.0
    %162 = vmatprep.subr.mxu0 0.0
    %163 = vmatpush1.msra.mxu0 0.0
    %164 = vmatprep.subr.mxu0 0.0
    %165 = vmatpush1.msra.mxu0 0.0
    %166 = vmatprep.subr.mxu0 0.0
    %167 = vmatpush1.msra.mxu0 0.0
    %168 = vmatprep.subr.mxu0 0.0
    %169 = vmatpush1.msra.mxu0 0.0
    %170 = vmatprep.subr.mxu0 0.0
    %171 = vmatpush1.msra.mxu0 0.0
    %172 = vmatprep.subr.mxu0 0.0
    %173 = vmatpush1.msra.mxu0 0.0
    %174 = vmatprep.subr.mxu0 0.0
    %175 = vmatpush1.msra.mxu0 0.0
    %176 = vmatprep.subr.mxu0 0.0
    %177 = vmatpush1.msra.mxu0 0.0
    %178 = vmatprep.subr.mxu0 0.0
    %179 = vmatpush1.msra.mxu0 0.0
    %180 = vmatprep.subr.mxu0 0.0
    %181 = vmatpush1.msra.mxu0 0.0
    %182 = vmatprep.subr.mxu0 0.0
    %183 = vmatpush1.msra.mxu0 0.0
    %184 = vmatprep.subr.mxu0 0.0
    %185 = vmatpush1.msra.mxu0 0.0
    %186 = vmatprep.subr.mxu0 0.0
    %187 = vmatpush1.msra.mxu0 0.0
    %188 = vmatprep.subr.mxu0 0.0
    %189 = vmatpush1.msra.mxu0 0.0
    %190 = vmatprep.subr.mxu0 0.0
    %191 = vmatpush1.msra.mxu0 0.0
    %192 = vmatprep.subr.mxu0 0.0
    %193 = vmatpush1.msra.mxu0 0.0
    %194 = vmatprep.subr.mxu0 0.0
    %195 = vmatpush1.msra.mxu0 0.0
    %196 = vmatprep.mubr.f32.mxu0 0.0
    %197 = vmatmul.mubr.f32.gmra.mrb[0].mxu0 %v130
    %v198 = vpop.f32.mrb[0].mxu0
    %v199 = vadd.f32 0.0, %v198
    %v200 = vpop.f32.mrb[0].mxu0
    %201 = vdwg.mxu0
    %v202 = vadd.f32 %v114, %v199
    %v203 = vxor.u32 %v202, 2147483648
    %v204 = vmul.f32 %v203, 1.442695
    %v205 = vpow.pop %v204
    %v206 = vadd.f32 %v205, 1.0
    %v207 = vrcp.pop %v206
    %v208 = vmul.f32 1.0, %v207
    %210 = vrot.lane.b32.xlu0 %v126, 64
    %v211 = vpop.permute.xlu0 %210
    %v213 = vadd.f32 %v199, %v211
    %215 = vrot.lane.b32.xlu0 %v213, 64
    %v216 = vpop.permute.xlu0 %215
    %v218 = vmul.f32 %v208, %v216
    %220 = vrot.lane.b32.xlu0 %v218, 64
    %v221 = vpop.permute.xlu0 %220
    %v223 = vadd.f32 %v114, %v221
    %v224 = vtanh.pop %v223
    %v225 = vsub.f32 1.0, %v208
    %227 = vrot.lane.b32.xlu0 %v224, 96
    %v228 = vpop.permute.xlu0 %227
    %v230 = vmul.f32 %v225, %v228
    %231 = vrot.lane.b32.xlu0 %v127, 32
    %v232 = vpop.permute.xlu0 %231
    %v234 = vmul.f32 %v208, %v232
    %v235 = vadd.f32 %v230, %v234
    %237 = vrot.lane.b32.xlu0 %v235, 96
    %v238 = vpop.permute.xlu0 %237
    %v239 = vsel %vm128, %v238, 0
    %241 = vmatprep.subr.mxu0 0.0
    %242 = vmatpush1.msra.mxu0 %v24
    %243 = vmatprep.subr.mxu0 0.0
    %244 = vmatpush1.msra.mxu0 %v25
    %245 = vmatprep.subr.mxu0 0.0
    %246 = vmatpush1.msra.mxu0 %v26
    %247 = vmatprep.subr.mxu0 0.0
    %248 = vmatpush1.msra.mxu0 %v27
    %249 = vmatprep.subr.mxu0 0.0
    %250 = vmatpush1.msra.mxu0 0.0
    %251 = vmatprep.subr.mxu0 0.0
    %252 = vmatpush1.msra.mxu0 0.0
    %253 = vmatprep.subr.mxu0 0.0
    %254 = vmatpush1.msra.mxu0 0.0
    %255 = vmatprep.subr.mxu0 0.0
    %256 = vmatpush1.msra.mxu0 0.0
    %257 = vmatprep.subr.mxu0 0.0
    %258 = vmatpush1.msra.mxu0 0.0
    %259 = vmatprep.subr.mxu0 0.0
    %260 = vmatpush1.msra.mxu0 0.0
    %261 = vmatprep.subr.mxu0 0.0
    %262 = vmatpush1.msra.mxu0 0.0
    %263 = vmatprep.subr.mxu0 0.0
    %264 = vmatpush1.msra.mxu0 0.0
    %265 = vmatprep.subr.mxu0 0.0
    %266 = vmatpush1.msra.mxu0 0.0
    %267 = vmatprep.subr.mxu0 0.0
    %268 = vmatpush1.msra.mxu0 0.0
    %269 = vmatprep.subr.mxu0 0.0
    %270 = vmatpush1.msra.mxu0 0.0
    %271 = vmatprep.subr.mxu0 0.0
    %272 = vmatpush1.msra.mxu0 0.0
    %273 = vmatprep.subr.mxu0 0.0
    %274 = vmatpush1.msra.mxu0 0.0
    %275 = vmatprep.subr.mxu0 0.0
    %276 = vmatpush1.msra.mxu0 0.0
    %277 = vmatprep.subr.mxu0 0.0
    %278 = vmatpush1.msra.mxu0 0.0
    %279 = vmatprep.subr.mxu0 0.0
    %280 = vmatpush1.msra.mxu0 0.0
    %281 = vmatprep.subr.mxu0 0.0
    %282 = vmatpush1.msra.mxu0 0.0
    %283 = vmatprep.subr.mxu0 0.0
    %284 = vmatpush1.msra.mxu0 0.0
    %285 = vmatprep.subr.mxu0 0.0
    %286 = vmatpush1.msra.mxu0 0.0
    %287 = vmatprep.subr.mxu0 0.0
    %288 = vmatpush1.msra.mxu0 0.0
    %289 = vmatprep.subr.mxu0 0.0
    %290 = vmatpush1.msra.mxu0 0.0
    %291 = vmatprep.subr.mxu0 0.0
    %292 = vmatpush1.msra.mxu0 0.0
    %293 = vmatprep.subr.mxu0 0.0
    %294 = vmatpush1.msra.mxu0 0.0
    %295 = vmatprep.subr.mxu0 0.0
    %296 = vmatpush1.msra.mxu0 0.0
    %297 = vmatprep.subr.mxu0 0.0
    %298 = vmatpush1.msra.mxu0 0.0
    %299 = vmatprep.subr.mxu0 0.0
    %300 = vmatpush1.msra.mxu0 0.0
    %301 = vmatprep.subr.mxu0 0.0
    %302 = vmatpush1.msra.mxu0 0.0
    %303 = vmatprep.subr.mxu0 0.0
    %304 = vmatpush1.msra.mxu0 0.0
    %305 = vmatprep.mubr.f32.mxu0 0.0
    %306 = vmatmul.mubr.f32.gmra.mrb[0].mxu0 %v239
    %v307 = vpop.f32.mrb[0].mxu0
    %v308 = vadd.f32 0.0, %v307
    %v309 = vpop.f32.mrb[0].mxu0
    %310 = vdwg.mxu0
    %v312 = vrot.slane %v308, 6
    %v314 = vadd.f32 %v114, %v312
    %v315 = vxor.u32 %v314, 2147483648
    %v316 = vmul.f32 %v315, 1.442695
    %v317 = vpow.pop %v316
    %v318 = vadd.f32 %v317, 1.0
    %v319 = vrcp.pop %v318
    %v320 = vmul.f32 1.0, %v319
    %v321 = vadd.f32 %v308, %v211
    %v323 = vrot.slane %v321, 6
    %324 = vrot.lane.b32.xlu0 %v323, 64
    %v325 = vpop.permute.xlu0 %324
    %v327 = vmul.f32 %v320, %v325
    %329 = vrot.lane.b32.xlu0 %v327, 64
    %v330 = vpop.permute.xlu0 %329
    %v332 = vadd.f32 %v114, %v330
    %v333 = vtanh.pop %v332
    %v334 = vsub.f32 1.0, %v320
    %336 = vrot.lane.b32.xlu0 %v333, 96
    %v337 = vpop.permute.xlu0 %336
    %v339 = vmul.f32 %v334, %v337
    %v340 = vrot.slane %v235, 6
    %v342 = vmul.f32 %v320, %v340
    %v343 = vadd.f32 %v339, %v342
    %v345 = vrot.slane %v343, 2
    %346 = vrot.lane.b32.xlu0 %v345, 96
    %v347 = vpop.permute.xlu0 %346
    %v348 = vsel %vm128, %v347, 0
    %350 = vmatprep.subr.mxu0 0.0
    %351 = vmatpush1.msra.mxu0 %v24
    %352 = vmatprep.subr.mxu0 0.0
    %353 = vmatpush1.msra.mxu0 %v25
    %354 = vmatprep.subr.mxu0 0.0
    %355 = vmatpush1.msra.mxu0 %v26
    %356 = vmatprep.subr.mxu0 0.0
    %357 = vmatpush1.msra.mxu0 %v27
    %358 = vmatprep.subr.mxu0 0.0
    %359 = vmatpush1.msra.mxu0 0.0
    %360 = vmatprep.subr.mxu0 0.0
    %361 = vmatpush1.msra.mxu0 0.0
    %362 = vmatprep.subr.mxu0 0.0
    %363 = vmatpush1.msra.mxu0 0.0
    %364 = vmatprep.subr.mxu0 0.0
    %365 = vmatpush1.msra.mxu0 0.0
    %366 = vmatprep.subr.mxu0 0.0
    %367 = vmatpush1.msra.mxu0 0.0
    %368 = vmatprep.subr.mxu0 0.0
    %369 = vmatpush1.msra.mxu0 0.0
    %370 = vmatprep.subr.mxu0 0.0
    %371 = vmatpush1.msra.mxu0 0.0
    %372 = vmatprep.subr.mxu0 0.0
    %373 = vmatpush1.msra.mxu0 0.0
    %374 = vmatprep.subr.mxu0 0.0
    %375 = vmatpush1.msra.mxu0 0.0
    %376 = vmatprep.subr.mxu0 0.0
    %377 = vmatpush1.msra.mxu0 0.0
    %378 = vmatprep.subr.mxu0 0.0
    %379 = vmatpush1.msra.mxu0 0.0
    %380 = vmatprep.subr.mxu0 0.0
    %381 = vmatpush1.msra.mxu0 0.0
    %382 = vmatprep.subr.mxu0 0.0
    %383 = vmatpush1.msra.mxu0 0.0
    %384 = vmatprep.subr.mxu0 0.0
    %385 = vmatpush1.msra.mxu0 0.0
    %386 = vmatprep.subr.mxu0 0.0
    %387 = vmatpush1.msra.mxu0 0.0
    %388 = vmatprep.subr.mxu0 0.0
    %389 = vmatpush1.msra.mxu0 0.0
    %390 = vmatprep.subr.mxu0 0.0
    %391 = vmatpush1.msra.mxu0 0.0
    %392 = vmatprep.subr.mxu0 0.0
    %393 = vmatpush1.msra.mxu0 0.0
    %394 = vmatprep.subr.mxu0 0.0
    %395 = vmatpush1.msra.mxu0 0.0
    %396 = vmatprep.subr.mxu0 0.0
    %397 = vmatpush1.msra.mxu0 0.0
    %398 = vmatprep.subr.mxu0 0.0
    %399 = vmatpush1.msra.mxu0 0.0
    %400 = vmatprep.subr.mxu0 0.0
    %401 = vmatpush1.msra.mxu0 0.0
    %402 = vmatprep.subr.mxu0 0.0
    %403 = vmatpush1.msra.mxu0 0.0
    %404 = vmatprep.subr.mxu0 0.0
    %405 = vmatpush1.msra.mxu0 0.0
    %406 = vmatprep.subr.mxu0 0.0
    %407 = vmatpush1.msra.mxu0 0.0
    %408 = vmatprep.subr.mxu0 0.0
    %409 = vmatpush1.msra.mxu0 0.0
    %410 = vmatprep.subr.mxu0 0.0
    %411 = vmatpush1.msra.mxu0 0.0
    %412 = vmatprep.subr.mxu0 0.0
    %413 = vmatpush1.msra.mxu0 0.0
    %414 = vmatprep.mubr.f32.mxu0 0.0
    %415 = vmatmul.mubr.f32.gmra.mrb[0].mxu0 %v348
    %v416 = vpop.f32.mrb[0].mxu0
    %v417 = vadd.f32 0.0, %v416
    %v418 = vpop.f32.mrb[0].mxu0
    %419 = vdwg.mxu0
    %v421 = vrot.slane %v417, 4
    %v423 = vadd.f32 %v114, %v421
    %v424 = vxor.u32 %v423, 2147483648
    %v425 = vmul.f32 %v424, 1.442695
    %v426 = vpow.pop %v425
    %v427 = vadd.f32 %v426, 1.0
    %v428 = vrcp.pop %v427
    %v429 = vmul.f32 1.0, %v428
    %v430 = vadd.f32 %v417, %v211
    %v432 = vrot.slane %v430, 4
    %433 = vrot.lane.b32.xlu0 %v432, 64
    %v434 = vpop.permute.xlu0 %433
    %v436 = vmul.f32 %v429, %v434
    %438 = vrot.lane.b32.xlu0 %v436, 64
    %v439 = vpop.permute.xlu0 %438
    %v441 = vadd.f32 %v114, %v439
    %v442 = vtanh.pop %v441
    %v443 = vsub.f32 1.0, %v429
    %445 = vrot.lane.b32.xlu0 %v442, 96
    %v446 = vpop.permute.xlu0 %445
    %v448 = vmul.f32 %v443, %v446
    %v449 = vrot.slane %v343, 6
    %v451 = vmul.f32 %v429, %v449
    %v452 = vadd.f32 %v448, %v451
    %v454 = vrot.slane %v452, 4
    %455 = vrot.lane.b32.xlu0 %v454, 96
    %v456 = vpop.permute.xlu0 %455
    %v457 = vsel %vm128, %v456, 0
    %459 = vmatprep.subr.mxu0 0.0
    %460 = vmatpush1.msra.mxu0 %v24
    %461 = vmatprep.subr.mxu0 0.0
    %462 = vmatpush1.msra.mxu0 %v25
    %463 = vmatprep.subr.mxu0 0.0
    %464 = vmatpush1.msra.mxu0 %v26
    %465 = vmatprep.subr.mxu0 0.0
    %466 = vmatpush1.msra.mxu0 %v27
    %467 = vmatprep.subr.mxu0 0.0
    %468 = vmatpush1.msra.mxu0 0.0
    %469 = vmatprep.subr.mxu0 0.0
    %470 = vmatpush1.msra.mxu0 0.0
    %471 = vmatprep.subr.mxu0 0.0
    %472 = vmatpush1.msra.mxu0 0.0
    %473 = vmatprep.subr.mxu0 0.0
    %474 = vmatpush1.msra.mxu0 0.0
    %475 = vmatprep.subr.mxu0 0.0
    %476 = vmatpush1.msra.mxu0 0.0
    %477 = vmatprep.subr.mxu0 0.0
    %478 = vmatpush1.msra.mxu0 0.0
    %479 = vmatprep.subr.mxu0 0.0
    %480 = vmatpush1.msra.mxu0 0.0
    %481 = vmatprep.subr.mxu0 0.0
    %482 = vmatpush1.msra.mxu0 0.0
    %483 = vmatprep.subr.mxu0 0.0
    %484 = vmatpush1.msra.mxu0 0.0
    %485 = vmatprep.subr.mxu0 0.0
    %486 = vmatpush1.msra.mxu0 0.0
    %487 = vmatprep.subr.mxu0 0.0
    %488 = vmatpush1.msra.mxu0 0.0
    %489 = vmatprep.subr.mxu0 0.0
    %490 = vmatpush1.msra.mxu0 0.0
    %491 = vmatprep.subr.mxu0 0.0
    %492 = vmatpush1.msra.mxu0 0.0
    %493 = vmatprep.subr.mxu0 0.0
    %494 = vmatpush1.msra.mxu0 0.0
    %495 = vmatprep.subr.mxu0 0.0
    %496 = vmatpush1.msra.mxu0 0.0
    %497 = vmatprep.subr.mxu0 0.0
    %498 = vmatpush1.msra.mxu0 0.0
    %499 = vmatprep.subr.mxu0 0.0
    %500 = vmatpush1.msra.mxu0 0.0
    %501 = vmatprep.subr.mxu0 0.0
    %502 = vmatpush1.msra.mxu0 0.0
    %503 = vmatprep.subr.mxu0 0.0
    %504 = vmatpush1.msra.mxu0 0.0
    %505 = vmatprep.subr.mxu0 0.0
    %506 = vmatpush1.msra.mxu0 0.0
    %507 = vmatprep.subr.mxu0 0.0
    %508 = vmatpush1.msra.mxu0 0.0
    %509 = vmatprep.subr.mxu0 0.0
    %510 = vmatpush1.msra.mxu0 0.0
    %511 = vmatprep.subr.mxu0 0.0
    %512 = vmatpush1.msra.mxu0 0.0
    %513 = vmatprep.subr.mxu0 0.0
    %514 = vmatpush1.msra.mxu0 0.0
    %515 = vmatprep.subr.mxu0 0.0
    %516 = vmatpush1.msra.mxu0 0.0
    %517 = vmatprep.subr.mxu0 0.0
    %518 = vmatpush1.msra.mxu0 0.0
    %519 = vmatprep.subr.mxu0 0.0
    %520 = vmatpush1.msra.mxu0 0.0
    %521 = vmatprep.subr.mxu0 0.0
    %522 = vmatpush1.msra.mxu0 0.0
    %523 = vmatprep.mubr.f32.mxu0 0.0
    %524 = vmatmul.mubr.f32.gmra.mrb[0].mxu0 %v457
    %v525 = vpop.f32.mrb[0].mxu0
    %v526 = vadd.f32 0.0, %v525
    %v527 = vpop.f32.mrb[0].mxu0
    %528 = vdwg.mxu0
    %v530 = vrot.slane %v526, 2
    %v532 = vadd.f32 %v114, %v530
    %v533 = vxor.u32 %v532, 2147483648
    %v534 = vmul.f32 %v533, 1.442695
    %v535 = vpow.pop %v534
    %v536 = vadd.f32 %v535, 1.0
    %v537 = vrcp.pop %v536
    %v538 = vmul.f32 1.0, %v537
    %v539 = vadd.f32 %v526, %v211
    %v541 = vrot.slane %v539, 2
    %542 = vrot.lane.b32.xlu0 %v541, 64
    %v543 = vpop.permute.xlu0 %542
    %v545 = vmul.f32 %v538, %v543
    %547 = vrot.lane.b32.xlu0 %v545, 64
    %v548 = vpop.permute.xlu0 %547
    %v550 = vadd.f32 %v114, %v548
    %v551 = vtanh.pop %v550
    %v552 = vsub.f32 1.0, %v538
    %554 = vrot.lane.b32.xlu0 %v551, 96
    %v555 = vpop.permute.xlu0 %554
    %v557 = vmul.f32 %v552, %v555
    %v558 = vrot.slane %v452, 6
    %v560 = vmul.f32 %v538, %v558
    %v561 = vadd.f32 %v557, %v560
    %v563 = vrot.slane %v561, 6
    %564 = vrot.lane.b32.xlu0 %v563, 96
    %v565 = vpop.permute.xlu0 %564
    %v566 = vsel %vm128, %v565, 0
    %568 = vmatprep.subr.mxu0 0.0
    %569 = vmatpush1.msra.mxu0 %v24
    %570 = vmatprep.subr.mxu0 0.0
    %571 = vmatpush1.msra.mxu0 %v25
    %572 = vmatprep.subr.mxu0 0.0
    %573 = vmatpush1.msra.mxu0 %v26
    %574 = vmatprep.subr.mxu0 0.0
    %575 = vmatpush1.msra.mxu0 %v27
    %576 = vmatprep.subr.mxu0 0.0
    %577 = vmatpush1.msra.mxu0 0.0
    %578 = vmatprep.subr.mxu0 0.0
    %579 = vmatpush1.msra.mxu0 0.0
    %580 = vmatprep.subr.mxu0 0.0
    %581 = vmatpush1.msra.mxu0 0.0
    %582 = vmatprep.subr.mxu0 0.0
    %583 = vmatpush1.msra.mxu0 0.0
    %584 = vmatprep.subr.mxu0 0.0
    %585 = vmatpush1.msra.mxu0 0.0
    %586 = vmatprep.subr.mxu0 0.0
    %587 = vmatpush1.msra.mxu0 0.0
    %588 = vmatprep.subr.mxu0 0.0
    %589 = vmatpush1.msra.mxu0 0.0
    %590 = vmatprep.subr.mxu0 0.0
    %591 = vmatpush1.msra.mxu0 0.0
    %592 = vmatprep.subr.mxu0 0.0
    %593 = vmatpush1.msra.mxu0 0.0
    %594 = vmatprep.subr.mxu0 0.0
    %595 = vmatpush1.msra.mxu0 0.0
    %596 = vmatprep.subr.mxu0 0.0
    %597 = vmatpush1.msra.mxu0 0.0
    %598 = vmatprep.subr.mxu0 0.0
    %599 = vmatpush1.msra.mxu0 0.0
    %600 = vmatprep.subr.mxu0 0.0
    %601 = vmatpush1.msra.mxu0 0.0
    %602 = vmatprep.subr.mxu0 0.0
    %603 = vmatpush1.msra.mxu0 0.0
    %604 = vmatprep.subr.mxu0 0.0
    %605 = vmatpush1.msra.mxu0 0.0
    %606 = vmatprep.subr.mxu0 0.0
    %607 = vmatpush1.msra.mxu0 0.0
    %608 = vmatprep.subr.mxu0 0.0
    %609 = vmatpush1.msra.mxu0 0.0
    %610 = vmatprep.subr.mxu0 0.0
    %611 = vmatpush1.msra.mxu0 0.0
    %612 = vmatprep.subr.mxu0 0.0
    %613 = vmatpush1.msra.mxu0 0.0
    %614 = vmatprep.subr.mxu0 0.0
    %615 = vmatpush1.msra.mxu0 0.0
    %616 = vmatprep.subr.mxu0 0.0
    %617 = vmatpush1.msra.mxu0 0.0
    %618 = vmatprep.subr.mxu0 0.0
    %619 = vmatpush1.msra.mxu0 0.0
    %620 = vmatprep.subr.mxu0 0.0
    %621 = vmatpush1.msra.mxu0 0.0
    %622 = vmatprep.subr.mxu0 0.0
    %623 = vmatpush1.msra.mxu0 0.0
    %624 = vmatprep.subr.mxu0 0.0
    %625 = vmatpush1.msra.mxu0 0.0
    %626 = vmatprep.subr.mxu0 0.0
    %627 = vmatpush1.msra.mxu0 0.0
    %628 = vmatprep.subr.mxu0 0.0
    %629 = vmatpush1.msra.mxu0 0.0
    %630 = vmatprep.subr.mxu0 0.0
    %631 = vmatpush1.msra.mxu0 0.0
    %632 = vmatprep.mubr.f32.mxu0 0.0
    %633 = vmatmul.mubr.f32.gmra.mrb[0].mxu0 %v566
    %v634 = vpop.f32.mrb[0].mxu0
    %v635 = vadd.f32 0.0, %v634
    %v636 = vpop.f32.mrb[0].mxu0
    %637 = vdwg.mxu0
    %v638 = vadd.f32 %v119, %v635
    %v639 = vxor.u32 %v638, 2147483648
    %v640 = vmul.f32 %v639, 1.442695
    %v641 = vpow.pop %v640
    %v642 = vadd.f32 %v641, 1.0
    %v643 = vrcp.pop %v642
    %v644 = vmul.f32 1.0, %v643
    %v645 = vadd.f32 %v635, %v211
    %647 = vrot.lane.b32.xlu0 %v645, 64
    %v648 = vpop.permute.xlu0 %647
    %v650 = vmul.f32 %v644, %v648
    %652 = vrot.lane.b32.xlu0 %v650, 64
    %v653 = vpop.permute.xlu0 %652
    %v655 = vadd.f32 %v119, %v653
    %v656 = vtanh.pop %v655
    %v657 = vsub.f32 1.0, %v644
    %659 = vrot.lane.b32.xlu0 %v656, 96
    %v660 = vpop.permute.xlu0 %659
    %v662 = vmul.f32 %v657, %v660
    %v664 = vmul.f32 %v644, %v563
    %v665 = vadd.f32 %v662, %v664
    %667 = vrot.lane.b32.xlu0 %v665, 96
    %v668 = vpop.permute.xlu0 %667
    %v669 = vsel %vm128, %v668, 0
    %671 = vmatprep.subr.mxu0 0.0
    %672 = vmatpush1.msra.mxu0 %v24
    %673 = vmatprep.subr.mxu0 0.0
    %674 = vmatpush1.msra.mxu0 %v25
    %675 = vmatprep.subr.mxu0 0.0
    %676 = vmatpush1.msra.mxu0 %v26
    %677 = vmatprep.subr.mxu0 0.0
    %678 = vmatpush1.msra.mxu0 %v27
    %679 = vmatprep.subr.mxu0 0.0
    %680 = vmatpush1.msra.mxu0 0.0
    %681 = vmatprep.subr.mxu0 0.0
    %682 = vmatpush1.msra.mxu0 0.0
    %683 = vmatprep.subr.mxu0 0.0
    %684 = vmatpush1.msra.mxu0 0.0
    %685 = vmatprep.subr.mxu0 0.0
    %686 = vmatpush1.msra.mxu0 0.0
    %687 = vmatprep.subr.mxu0 0.0
    %688 = vmatpush1.msra.mxu0 0.0
    %689 = vmatprep.subr.mxu0 0.0
    %690 = vmatpush1.msra.mxu0 0.0
    %691 = vmatprep.subr.mxu0 0.0
    %692 = vmatpush1.msra.mxu0 0.0
    %693 = vmatprep.subr.mxu0 0.0
    %694 = vmatpush1.msra.mxu0 0.0
    %695 = vmatprep.subr.mxu0 0.0
    %696 = vmatpush1.msra.mxu0 0.0
    %697 = vmatprep.subr.mxu0 0.0
    %698 = vmatpush1.msra.mxu0 0.0
    %699 = vmatprep.subr.mxu0 0.0
    %700 = vmatpush1.msra.mxu0 0.0
    %701 = vmatprep.subr.mxu0 0.0
    %702 = vmatpush1.msra.mxu0 0.0
    %703 = vmatprep.subr.mxu0 0.0
    %704 = vmatpush1.msra.mxu0 0.0
    %705 = vmatprep.subr.mxu0 0.0
    %706 = vmatpush1.msra.mxu0 0.0
    %707 = vmatprep.subr.mxu0 0.0
    %708 = vmatpush1.msra.mxu0 0.0
    %709 = vmatprep.subr.mxu0 0.0
    %710 = vmatpush1.msra.mxu0 0.0
    %711 = vmatprep.subr.mxu0 0.0
    %712 = vmatpush1.msra.mxu0 0.0
    %713 = vmatprep.subr.mxu0 0.0
    %714 = vmatpush1.msra.mxu0 0.0
    %715 = vmatprep.subr.mxu0 0.0
    %716 = vmatpush1.msra.mxu0 0.0
    %717 = vmatprep.subr.mxu0 0.0
    %718 = vmatpush1.msra.mxu0 0.0
    %719 = vmatprep.subr.mxu0 0.0
    %720 = vmatpush1.msra.mxu0 0.0
    %721 = vmatprep.subr.mxu0 0.0
    %722 = vmatpush1.msra.mxu0 0.0
    %723 = vmatprep.subr.mxu0 0.0
    %724 = vmatpush1.msra.mxu0 0.0
    %725 = vmatprep.subr.mxu0 0.0
    %726 = vmatpush1.msra.mxu0 0.0
    %727 = vmatprep.subr.mxu0 0.0
    %728 = vmatpush1.msra.mxu0 0.0
    %729 = vmatprep.subr.mxu0 0.0
    %730 = vmatpush1.msra.mxu0 0.0
    %731 = vmatprep.subr.mxu0 0.0
    %732 = vmatpush1.msra.mxu0 0.0
    %733 = vmatprep.subr.mxu0 0.0
    %734 = vmatpush1.msra.mxu0 0.0
    %735 = vmatprep.mubr.f32.mxu0 0.0
    %736 = vmatmul.mubr.f32.gmra.mrb[0].mxu0 %v669
    %v737 = vpop.f32.mrb[0].mxu0
    %v738 = vadd.f32 0.0, %v737
    %v739 = vpop.f32.mrb[0].mxu0
    %740 = vdwg.mxu0
    %v742 = vrot.slane %v738, 6
    %v744 = vadd.f32 %v119, %v742
    %v745 = vxor.u32 %v744, 2147483648
    %v746 = vmul.f32 %v745, 1.442695
    %v747 = vpow.pop %v746
    %v748 = vadd.f32 %v747, 1.0
    %v749 = vrcp.pop %v748
    %v750 = vmul.f32 1.0, %v749
    %v751 = vadd.f32 %v738, %v211
    %v753 = vrot.slane %v751, 6
    %754 = vrot.lane.b32.xlu0 %v753, 64
    %v755 = vpop.permute.xlu0 %754
    %v757 = vmul.f32 %v750, %v755
    %759 = vrot.lane.b32.xlu0 %v757, 64
    %v760 = vpop.permute.xlu0 %759
    %v762 = vadd.f32 %v119, %v760
    %v763 = vtanh.pop %v762
    %v764 = vsub.f32 1.0, %v750
    %766 = vrot.lane.b32.xlu0 %v763, 96
    %v767 = vpop.permute.xlu0 %766
    %v769 = vmul.f32 %v764, %v767
    %v770 = vrot.slane %v665, 6
    %v772 = vmul.f32 %v750, %v770
    %v773 = vadd.f32 %v769, %v772
    %v775 = vrot.slane %v773, 2
    %776 = vrot.lane.b32.xlu0 %v775, 96
    %v777 = vpop.permute.xlu0 %776
    %v778 = vsel %vm128, %v777, 0
    %780 = vmatprep.subr.mxu0 0.0
    %781 = vmatpush1.msra.mxu0 %v24
    %782 = vmatprep.subr.mxu0 0.0
    %783 = vmatpush1.msra.mxu0 %v25
    %784 = vmatprep.subr.mxu0 0.0
    %785 = vmatpush1.msra.mxu0 %v26
    %786 = vmatprep.subr.mxu0 0.0
    %787 = vmatpush1.msra.mxu0 %v27
    %788 = vmatprep.subr.mxu0 0.0
    %789 = vmatpush1.msra.mxu0 0.0
    %790 = vmatprep.subr.mxu0 0.0
    %791 = vmatpush1.msra.mxu0 0.0
    %792 = vmatprep.subr.mxu0 0.0
    %793 = vmatpush1.msra.mxu0 0.0
    %794 = vmatprep.subr.mxu0 0.0
    %795 = vmatpush1.msra.mxu0 0.0
    %796 = vmatprep.subr.mxu0 0.0
    %797 = vmatpush1.msra.mxu0 0.0
    %798 = vmatprep.subr.mxu0 0.0
    %799 = vmatpush1.msra.mxu0 0.0
    %800 = vmatprep.subr.mxu0 0.0
    %801 = vmatpush1.msra.mxu0 0.0
    %802 = vmatprep.subr.mxu0 0.0
    %803 = vmatpush1.msra.mxu0 0.0
    %804 = vmatprep.subr.mxu0 0.0
    %805 = vmatpush1.msra.mxu0 0.0
    %806 = vmatprep.subr.mxu0 0.0
    %807 = vmatpush1.msra.mxu0 0.0
    %808 = vmatprep.subr.mxu0 0.0
    %809 = vmatpush1.msra.mxu0 0.0
    %810 = vmatprep.subr.mxu0 0.0
    %811 = vmatpush1.msra.mxu0 0.0
    %812 = vmatprep.subr.mxu0 0.0
    %813 = vmatpush1.msra.mxu0 0.0
    %814 = vmatprep.subr.mxu0 0.0
    %815 = vmatpush1.msra.mxu0 0.0
    %816 = vmatprep.subr.mxu0 0.0
    %817 = vmatpush1.msra.mxu0 0.0
    %818 = vmatprep.subr.mxu0 0.0
    %819 = vmatpush1.msra.mxu0 0.0
    %820 = vmatprep.subr.mxu0 0.0
    %821 = vmatpush1.msra.mxu0 0.0
    %822 = vmatprep.subr.mxu0 0.0
    %823 = vmatpush1.msra.mxu0 0.0
    %824 = vmatprep.subr.mxu0 0.0
    %825 = vmatpush1.msra.mxu0 0.0
    %826 = vmatprep.subr.mxu0 0.0
    %827 = vmatpush1.msra.mxu0 0.0
    %828 = vmatprep.subr.mxu0 0.0
    %829 = vmatpush1.msra.mxu0 0.0
    %830 = vmatprep.subr.mxu0 0.0
    %831 = vmatpush1.msra.mxu0 0.0
    %832 = vmatprep.subr.mxu0 0.0
    %833 = vmatpush1.msra.mxu0 0.0
    %834 = vmatprep.subr.mxu0 0.0
    %835 = vmatpush1.msra.mxu0 0.0
    %836 = vmatprep.subr.mxu0 0.0
    %837 = vmatpush1.msra.mxu0 0.0
    %838 = vmatprep.subr.mxu0 0.0
    %839 = vmatpush1.msra.mxu0 0.0
    %840 = vmatprep.subr.mxu0 0.0
    %841 = vmatpush1.msra.mxu0 0.0
    %842 = vmatprep.subr.mxu0 0.0
    %843 = vmatpush1.msra.mxu0 0.0
    %844 = vmatprep.mubr.f32.mxu0 0.0
    %845 = vmatmul.mubr.f32.gmra.mrb[0].mxu0 %v778
    %v846 = vpop.f32.mrb[0].mxu0
    %v847 = vadd.f32 0.0, %v846
    %v848 = vpop.f32.mrb[0].mxu0
    %849 = vdwg.mxu0
    %v851 = vrot.slane %v847, 4
    %v853 = vadd.f32 %v119, %v851
    %v854 = vxor.u32 %v853, 2147483648
    %v855 = vmul.f32 %v854, 1.442695
    %v856 = vpow.pop %v855
    %v857 = vadd.f32 %v856, 1.0
    %v858 = vrcp.pop %v857
    %v859 = vmul.f32 1.0, %v858
    %v860 = vadd.f32 %v847, %v211
    %v862 = vrot.slane %v860, 4
    %863 = vrot.lane.b32.xlu0 %v862, 64
    %v864 = vpop.permute.xlu0 %863
    %v866 = vmul.f32 %v859, %v864
    %868 = vrot.lane.b32.xlu0 %v866, 64
    %v869 = vpop.permute.xlu0 %868
    %v871 = vadd.f32 %v119, %v869
    %v872 = vtanh.pop %v871
    %v873 = vsub.f32 1.0, %v859
    %875 = vrot.lane.b32.xlu0 %v872, 96
    %v876 = vpop.permute.xlu0 %875
    %v878 = vmul.f32 %v873, %v876
    %v879 = vrot.slane %v773, 6
    %v881 = vmul.f32 %v859, %v879
    %v882 = vadd.f32 %v878, %v881
    %v884 = vrot.slane %v882, 4
    %885 = vrot.lane.b32.xlu0 %v884, 96
    %v886 = vpop.permute.xlu0 %885
    %v887 = vsel %vm128, %v886, 0
    %889 = vmatprep.subr.mxu0 0.0
    %890 = vmatpush1.msra.mxu0 %v24
    %891 = vmatprep.subr.mxu0 0.0
    %892 = vmatpush1.msra.mxu0 %v25
    %893 = vmatprep.subr.mxu0 0.0
    %894 = vmatpush1.msra.mxu0 %v26
    %895 = vmatprep.subr.mxu0 0.0
    %896 = vmatpush1.msra.mxu0 %v27
    %897 = vmatprep.subr.mxu0 0.0
    %898 = vmatpush1.msra.mxu0 0.0
    %899 = vmatprep.subr.mxu0 0.0
    %900 = vmatpush1.msra.mxu0 0.0
    %901 = vmatprep.subr.mxu0 0.0
    %902 = vmatpush1.msra.mxu0 0.0
    %903 = vmatprep.subr.mxu0 0.0
    %904 = vmatpush1.msra.mxu0 0.0
    %905 = vmatprep.subr.mxu0 0.0
    %906 = vmatpush1.msra.mxu0 0.0
    %907 = vmatprep.subr.mxu0 0.0
    %908 = vmatpush1.msra.mxu0 0.0
    %909 = vmatprep.subr.mxu0 0.0
    %910 = vmatpush1.msra.mxu0 0.0
    %911 = vmatprep.subr.mxu0 0.0
    %912 = vmatpush1.msra.mxu0 0.0
    %913 = vmatprep.subr.mxu0 0.0
    %914 = vmatpush1.msra.mxu0 0.0
    %915 = vmatprep.subr.mxu0 0.0
    %916 = vmatpush1.msra.mxu0 0.0
    %917 = vmatprep.subr.mxu0 0.0
    %918 = vmatpush1.msra.mxu0 0.0
    %919 = vmatprep.subr.mxu0 0.0
    %920 = vmatpush1.msra.mxu0 0.0
    %921 = vmatprep.subr.mxu0 0.0
    %922 = vmatpush1.msra.mxu0 0.0
    %923 = vmatprep.subr.mxu0 0.0
    %924 = vmatpush1.msra.mxu0 0.0
    %925 = vmatprep.subr.mxu0 0.0
    %926 = vmatpush1.msra.mxu0 0.0
    %927 = vmatprep.subr.mxu0 0.0
    %928 = vmatpush1.msra.mxu0 0.0
    %929 = vmatprep.subr.mxu0 0.0
    %930 = vmatpush1.msra.mxu0 0.0
    %931 = vmatprep.subr.mxu0 0.0
    %932 = vmatpush1.msra.mxu0 0.0
    %933 = vmatprep.subr.mxu0 0.0
    %934 = vmatpush1.msra.mxu0 0.0
    %935 = vmatprep.subr.mxu0 0.0
    %936 = vmatpush1.msra.mxu0 0.0
    %937 = vmatprep.subr.mxu0 0.0
    %938 = vmatpush1.msra.mxu0 0.0
    %939 = vmatprep.subr.mxu0 0.0
    %940 = vmatpush1.msra.mxu0 0.0
    %941 = vmatprep.subr.mxu0 0.0
    %942 = vmatpush1.msra.mxu0 0.0
    %943 = vmatprep.subr.mxu0 0.0
    %944 = vmatpush1.msra.mxu0 0.0
    %945 = vmatprep.subr.mxu0 0.0
    %946 = vmatpush1.msra.mxu0 0.0
    %947 = vmatprep.subr.mxu0 0.0
    %948 = vmatpush1.msra.mxu0 0.0
    %949 = vmatprep.subr.mxu0 0.0
    %950 = vmatpush1.msra.mxu0 0.0
    %951 = vmatprep.subr.mxu0 0.0
    %952 = vmatpush1.msra.mxu0 0.0
    %953 = vmatprep.mubr.f32.mxu0 0.0
    %954 = vmatmul.mubr.f32.gmra.mrb[0].mxu0 %v887
    %v955 = vpop.f32.mrb[0].mxu0
    %v956 = vadd.f32 0.0, %v955
    %v957 = vpop.f32.mrb[0].mxu0
    %958 = vdwg.mxu0
    %v960 = vrot.slane %v956, 2
    %v962 = vadd.f32 %v119, %v960
    %v963 = vxor.u32 %v962, 2147483648
    %v964 = vmul.f32 %v963, 1.442695
    %v965 = vpow.pop %v964
    %v966 = vadd.f32 %v965, 1.0
    %v967 = vrcp.pop %v966
    %v968 = vmul.f32 1.0, %v967
    %v969 = vadd.f32 %v956, %v211
    %v971 = vrot.slane %v969, 2
    %972 = vrot.lane.b32.xlu0 %v971, 64
    %v973 = vpop.permute.xlu0 %972
    %v975 = vmul.f32 %v968, %v973
    %977 = vrot.lane.b32.xlu0 %v975, 64
    %v978 = vpop.permute.xlu0 %977
    %v980 = vadd.f32 %v119, %v978
    %v981 = vtanh.pop %v980
    %v982 = vsub.f32 1.0, %v968
    %984 = vrot.lane.b32.xlu0 %v981, 96
    %v985 = vpop.permute.xlu0 %984
    %v987 = vmul.f32 %v982, %v985
    %v988 = vrot.slane %v882, 6
    %v990 = vmul.f32 %v968, %v988
    %v991 = vadd.f32 %v987, %v990
    %vm992 = vcmask 1041408
    %v993 = vsel %vm992, %v235, %v343
    %vm994 = vcmask 1043456
    %v995 = vsel %vm994, %v993, %v452
    %vm996 = vcmask 1045504
    %v997 = vsel %vm996, %v995, %v561
    %v998 = vsel %vm992, %v665, %v773
    %v999 = vsel %vm994, %v998, %v882
    %v1000 = vsel %vm996, %v999, %v991
    %1003 = vrot.lane.b32.xlu0 %v997, 96
    %v1004 = vpop.permute.xlu0 %1003
    %1005 = vrot.lane.b32.xlu0 %v1000, 96
    %v1006 = vpop.permute.xlu0 %1005
    %1009 = vst.msk [vmem:[#allocation2] sm:$0xff] %vm128, %v1004
    %1010 = vst.msk [vmem:[#allocation2 + $0x8] sm:$0xff] %vm128, %v1006
    %v1011 = vlaneseq
    %v1012 = vshrl.u32 %v1011, 7
    %v1013 = vsub.s32 0, %v1012
    %v1014 = vrot.slane %v32, %v1013
    %v1015 = vsel %vm128, %v1004, 0
    %v1017 = vsel %vm128, %v1006, 0
    %1019 = vmatprep.subr.mxu0 0.0
    %1020 = vmatpush1.msra.mxu0 %v28
    %1021 = vmatprep.subr.mxu0 0.0
    %1022 = vmatpush1.msra.mxu0 %v29
    %1023 = vmatprep.subr.mxu0 0.0
    %1024 = vmatpush1.msra.mxu0 %v30
    %1025 = vmatprep.subr.mxu0 0.0
    %1026 = vmatpush1.msra.mxu0 %v31
    %1027 = vmatprep.subr.mxu0 0.0
    %1028 = vmatpush1.msra.mxu0 0.0
    %1029 = vmatprep.subr.mxu0 0.0
    %1030 = vmatpush1.msra.mxu0 0.0
    %1031 = vmatprep.subr.mxu0 0.0
    %1032 = vmatpush1.msra.mxu0 0.0
    %1033 = vmatprep.subr.mxu0 0.0
    %1034 = vmatpush1.msra.mxu0 0.0
    %1035 = vmatprep.subr.mxu0 0.0
    %1036 = vmatpush1.msra.mxu0 0.0
    %1037 = vmatprep.subr.mxu0 0.0
    %1038 = vmatpush1.msra.mxu0 0.0
    %1039 = vmatprep.subr.mxu0 0.0
    %1040 = vmatpush1.msra.mxu0 0.0
    %1041 = vmatprep.subr.mxu0 0.0
    %1042 = vmatpush1.msra.mxu0 0.0
    %1043 = vmatprep.subr.mxu0 0.0
    %1044 = vmatpush1.msra.mxu0 0.0
    %1045 = vmatprep.subr.mxu0 0.0
    %1046 = vmatpush1.msra.mxu0 0.0
    %1047 = vmatprep.subr.mxu0 0.0
    %1048 = vmatpush1.msra.mxu0 0.0
    %1049 = vmatprep.subr.mxu0 0.0
    %1050 = vmatpush1.msra.mxu0 0.0
    %1051 = vmatprep.subr.mxu0 0.0
    %1052 = vmatpush1.msra.mxu0 0.0
    %1053 = vmatprep.subr.mxu0 0.0
    %1054 = vmatpush1.msra.mxu0 0.0
    %1055 = vmatprep.subr.mxu0 0.0
    %1056 = vmatpush1.msra.mxu0 0.0
    %1057 = vmatprep.subr.mxu0 0.0
    %1058 = vmatpush1.msra.mxu0 0.0
    %1059 = vmatprep.subr.mxu0 0.0
    %1060 = vmatpush1.msra.mxu0 0.0
    %1061 = vmatprep.subr.mxu0 0.0
    %1062 = vmatpush1.msra.mxu0 0.0
    %1063 = vmatprep.subr.mxu0 0.0
    %1064 = vmatpush1.msra.mxu0 0.0
    %1065 = vmatprep.subr.mxu0 0.0
    %1066 = vmatpush1.msra.mxu0 0.0
    %1067 = vmatprep.subr.mxu0 0.0
    %1068 = vmatpush1.msra.mxu0 0.0
    %1069 = vmatprep.subr.mxu0 0.0
    %1070 = vmatpush1.msra.mxu0 0.0
    %1071 = vmatprep.subr.mxu0 0.0
    %1072 = vmatpush1.msra.mxu0 0.0
    %1073 = vmatprep.subr.mxu0 0.0
    %1074 = vmatpush1.msra.mxu0 0.0
    %1075 = vmatprep.subr.mxu0 0.0
    %1076 = vmatpush1.msra.mxu0 0.0
    %1077 = vmatprep.subr.mxu0 0.0
    %1078 = vmatpush1.msra.mxu0 0.0
    %1079 = vmatprep.subr.mxu0 0.0
    %1080 = vmatpush1.msra.mxu0 0.0
    %1081 = vmatprep.subr.mxu0 0.0
    %1082 = vmatpush1.msra.mxu0 0.0
    %1083 = vmatprep.mubr.f32.mxu0 0.0
    %1084 = vmatmul.mubr.f32.gmra.mrb[0].mxu0 %v1015
    %v1085 = vpop.f32.mrb[0].mxu0
    %v1086 = vadd.f32 %v1014, %v1085
    %v1087 = vpop.f32.mrb[0].mxu0
    %1088 = vmatprep.mubr.f32.mxu0 0.0
    %1089 = vmatmul.mubr.f32.gmra.mrb[0].mxu0 %v1017
    %v1090 = vpop.f32.mrb[0].mxu0
    %v1091 = vadd.f32 %v1014, %v1090
    %v1092 = vpop.f32.mrb[0].mxu0
    %1093 = vdwg.mxu0
    %vm1094 = vcmask 31744
    %1095 = vst.msk [vmem:[%s5] sm:$0xff] %vm1094, %v1086
    %1096 = vst.msk [vmem:[%s5 + $0x8] sm:$0xff] %vm1094, %v1091
    // Predicated region
    $region22: #{net_forward.1} parent=1 // pred_check
      _
    $region23: #{net_forward.1} parent=1 // pred_check_branch
      %1098 = sbr.rel (0) target = $region25
    $region24: #{net_forward.1} parent=1 // pred_region
      _
    $region25: #{net_forward.1} parent=1 // pred_fallthru
      _
    // Predicated region
    $region26: #{net_forward.1} parent=1 // pred_check
      _
    $region27: #{net_forward.1} parent=1 // pred_check_branch
      %1100 = sbr.rel (0) target = $region29
    $region28: #{net_forward.1} parent=1 // pred_region
      %s1102 = ssub.s32 256, 256
      %1103 = vsyncadd [#allocation3], %s1102
      %s1104 = sshll.u32 [#allocation2], 4
      %s1105 = int_to_ptr.vmem [resolvable:$true] %s1104
      %1110 = dma.vmem_to_hbm [thread:$0]  %s1105, 256, %s6, [#allocation3], 128, 128, 8
    $region29: #{net_forward.1} parent=1 // pred_fallthru
      _
    // Predicated region
    $region30: #{net_forward.1} parent=1 // pred_check
      _
    $region31: #{net_forward.1} parent=1 // pred_check_branch
      %1112 = sbr.rel (0) target = $region33
    $region32: #{net_forward.1} parent=1 // pred_region
      _
    $region33: #{net_forward.1} parent=1 // pred_fallthru
      _
    // Predicated region
    $region34: #{net_forward.1} parent=1 // pred_check
      _
    $region35: #{net_forward.1} parent=1 // pred_check_branch
      %1114 = sbr.rel (0) target = $region37
    $region36: #{net_forward.1} parent=1 // pred_region
      %1115 = dma.done [#allocation3], 256
    $region37: #{net_forward.1} parent=1 // pred_fallthru
      _
    %1116 = vsyncpa [#allocation3], 1

</llo_original>
